<compile_context>
chip_gen: v7x
topology: tpu7x:2x2x1
jax: 0.10.0
libtpu: 0.0.40
codegen_flags: <defaults>
</compile_context>

<pallas_src>
import jax
import jax.numpy as jnp
from jax.experimental import pallas as pl
from jax.experimental.pallas import tpu as pltpu


def time_embedding_kernel(x_ref, w1_ref, b1_ref, w2_ref, b2_ref, o_ref):
    # x may arrive as f32 or bf16 from the producer; cast (no-op if already
    # bf16) so the MXU runs bf16 x bf16 -> f32.
    x = x_ref[...].astype(w1_ref.dtype)
    # First linear: (TB, E) @ (E, H), f32 accumulation on the MXU.
    h = jnp.dot(x, w1_ref[...], preferred_element_type=jnp.float32)
    h = h + b1_ref[...].astype(jnp.float32)
    # SiLU: exp and the approximate reciprocal both run on the EUP slot, so no
    # f32 VPU divide can bind on v5e at large batch tiles.
    h = h * pl.reciprocal(1.0 + jnp.exp(-h), approx=True)
    # Second linear: (TB, H) @ (H, H), f32 accumulation on the MXU.
    out = jnp.dot(h.astype(w2_ref.dtype), w2_ref[...],
                  preferred_element_type=jnp.float32)
    out = out + b2_ref[...].astype(jnp.float32)
    o_ref[...] = out.astype(o_ref.dtype)


def _round_up(x, m):
    return ((x + m - 1) // m) * m


def _cost_estimate(B, E, H, arrays, out_dtype):
    flops = 2 * B * E * H + 2 * B * H * H
    bytes_accessed = sum(a.size * a.dtype.itemsize for a in arrays)
    bytes_accessed += B * H * jnp.dtype(out_dtype).itemsize
    return pl.CostEstimate(flops=flops,
                           transcendentals=B * H,          # exp in SiLU
                           bytes_accessed=bytes_accessed)


def time_embedding(x, w1, b1, w2, b2, *, batch_tile=2048, out_dtype=None):
    """x: (B, E) f32 or bf16; w1: (E, H) bf16; b1: (1, H) f32;
    w2: (H, H) bf16; b2: (1, H) f32.  out_dtype defaults to x.dtype; pass
    jnp.bfloat16 to halve the output writeback stream."""
    B, E = x.shape
    H = w1.shape[1]
    out_dtype = x.dtype if out_dtype is None else out_dtype
    out_shape = jax.ShapeDtypeStruct((B, H), out_dtype)
    cost = _cost_estimate(B, E, H, (x, w1, b1, w2, b2), out_dtype)

    if B <= batch_tile:
        # Small batch: no grid — every operand is a single whole-array VMEM
        # block, so nothing is double-buffered and there is no per-step grid
        # overhead.  This regime is launch/latency bound; fuse into the
        # consumer if it ever matters.
        vmem = pl.BlockSpec(memory_space=pltpu.MemorySpace.VMEM)
        return pl.pallas_call(
            time_embedding_kernel,
            out_shape=out_shape,
            in_specs=[vmem, vmem, vmem, vmem, vmem],
            out_specs=vmem,
            cost_estimate=cost,
        )(x, w1, b1, w2, b2)

    # Large batch: tile B.  Tile selection (per review):
    #   * as large as possible (HBM/step-overhead bound) ...
    #   * ... but capped at 4096 rows so 2x(tb,E) x + 2x(tb,H) out buffers +
    #     the f32 (tb,H) SiLU intermediate stay inside v5e's scoped VMEM
    #     (with vmem_limit_bytes raised to 32 MiB below),
    #   * ... and shrunk so the grid keeps >= 4 steps, giving each of v7x's
    #     two TensorCores >= 2 pipelined steps of the "parallel" axis.
    MAX_TILE = 4096
    tb = min(batch_tile, MAX_TILE, max(256, _round_up(pl.cdiv(B, 4), 256)))
    grid = (pl.cdiv(B, tb),)
    # Weight / bias block indices never change -> DMA'd once, VMEM-resident.
    # NOTE: when B % tb != 0 the padded tail rows are uninitialized; exp on
    # garbage may produce inf/NaN in scratch, but the out-of-bounds writeback
    # is masked so results are correct.
    return pl.pallas_call(
        time_embedding_kernel,
        out_shape=out_shape,
        grid=grid,
        in_specs=[
            pl.BlockSpec((tb, E), lambda i: (i, 0)),
            pl.BlockSpec((E, H), lambda i: (0, 0)),
            pl.BlockSpec((1, H), lambda i: (0, 0)),
            pl.BlockSpec((H, H), lambda i: (0, 0)),
            pl.BlockSpec((1, H), lambda i: (0, 0)),
        ],
        out_specs=pl.BlockSpec((tb, H), lambda i: (i, 0)),
        compiler_params=pltpu.CompilerParams(
            dimension_semantics=("parallel",),
            vmem_limit_bytes=32 << 20),
        cost_estimate=cost,
    )(x, w1, b1, w2, b2)


def reference(x, w1, b1, w2, b2):
    # Pure-JAX reference emulating the kernel numerics: bf16 matmul inputs,
    # f32 accumulation, f32 SiLU (exact sigmoid) and bias adds.
    xw = x.astype(w1.dtype).astype(jnp.float32)
    h = xw @ w1.astype(jnp.float32) + b1.astype(jnp.float32)
    h = h * jax.nn.sigmoid(h)
    hw = h.astype(w2.dtype).astype(jnp.float32)
    return hw @ w2.astype(jnp.float32) + b2.astype(jnp.float32)


if __name__ == "__main__":
    n_embd = 32
    hidden = 4 * n_embd  # 128

    key = jax.random.PRNGKey(0)
    k_x, k_w1, k_b1, k_w2, k_b2, k_xl = jax.random.split(key, 6)

    # Deterministic synthetic parameters (PyTorch-Linear-like uniform init),
    # stored (in, out).  Weights in bf16, biases in f32.
    bound1 = 1.0 / (n_embd ** 0.5)
    bound2 = 1.0 / (hidden ** 0.5)
    w1 = jax.random.uniform(k_w1, (n_embd, hidden), jnp.float32,
                            -bound1, bound1).astype(jnp.bfloat16)
    b1 = jax.random.uniform(k_b1, (1, hidden), jnp.float32, -bound1, bound1)
    w2 = jax.random.uniform(k_w2, (hidden, hidden), jnp.float32,
                            -bound2, bound2).astype(jnp.bfloat16)
    b2 = jax.random.uniform(k_b2, (1, hidden), jnp.float32, -bound2, bound2)

    # Tolerance: bf16 weights + approx-EUP reciprocal in SiLU add ~1e-3-level
    # deviations vs the exact-sigmoid reference.
    ATOL = RTOL = 2e-2

    # --- Small batch (typical TimeEmbedding use): gridless single-block path.
    batch = 2
    x = jax.random.normal(k_x, (batch, n_embd), dtype=jnp.float32)
    out = jax.block_until_ready(time_embedding(x, w1, b1, w2, b2))
    ref = reference(x, w1, b1, w2, b2)
    assert out.shape == (batch, hidden), out.shape
    assert jnp.allclose(out, ref, atol=ATOL, rtol=RTOL), "small-batch mismatch"

    # --- Larger batch: exercises the batch-tiled "parallel" grid path with a
    # deliberately small batch_tile so test shapes stay small (production
    # default is batch_tile=2048, cap 4096).  bf16 output exercises the
    # slimmed writeback stream.
    big_batch = 512
    xl = jax.random.normal(k_xl, (big_batch, n_embd), dtype=jnp.float32)
    out_l = jax.block_until_ready(
        time_embedding(xl, w1, b1, w2, b2, batch_tile=128,
                       out_dtype=jnp.bfloat16))
    ref_l = reference(xl, w1, b1, w2, b2)
    assert out_l.shape == (big_batch, hidden), out_l.shape
    assert jnp.allclose(out_l.astype(jnp.float32), ref_l,
                        atol=ATOL, rtol=RTOL), "tiled mismatch"

    print("KERNEL_OK")
</pallas_src>

<mosaic_0001>
module attributes {stable_mosaic.version = 11 : i64} {
  func.func @time_embedding_kernel(%arg0: memref<2x32xf32, #tpu.memory_space<vmem>>, %arg1: memref<32x128xbf16, #tpu.memory_space<vmem>>, %arg2: memref<1x128xf32, #tpu.memory_space<vmem>>, %arg3: memref<128x128xbf16, #tpu.memory_space<vmem>>, %arg4: memref<1x128xf32, #tpu.memory_space<vmem>>, %arg5: memref<2x128xf32, #tpu.memory_space<vmem>>) attributes {dimension_semantics = [], scalar_prefetch = 0 : i64, scratch_operands = 0 : i64, tpu.core_type = #tpu.core_type<tc>} {
    %c0 = arith.constant 0 : index
    %c0_0 = arith.constant 0 : index
    %0 = vector.load %arg0[%c0, %c0_0] : memref<2x32xf32, #tpu.memory_space<vmem>>, vector<2x32xf32>
    %1 = arith.truncf %0 : vector<2x32xf32> to vector<2x32xbf16>
    %c0_1 = arith.constant 0 : index
    %c0_2 = arith.constant 0 : index
    %2 = vector.load %arg1[%c0_1, %c0_2] : memref<32x128xbf16, #tpu.memory_space<vmem>>, vector<32x128xbf16>
    %cst = arith.constant dense<0.000000e+00> : vector<2x128xf32>
    %3 = tpu.matmul %1, %2, %cst {dimension_numbers = #tpu.dot_dimension_numbers<[1], [0], [0], [1], [0, 0, 1, 1], [], []>} : vector<2x32xbf16>, vector<32x128xbf16>, vector<2x128xf32> -> vector<2x128xf32>
    %c0_3 = arith.constant 0 : index
    %c0_4 = arith.constant 0 : index
    %4 = vector.load %arg2[%c0_3, %c0_4] : memref<1x128xf32, #tpu.memory_space<vmem>>, vector<1x128xf32>
    %5 = vector.broadcast %4 : vector<1x128xf32> to vector<2x128xf32>
    %6 = arith.addf %3, %5 : vector<2x128xf32>
    %cst_5 = arith.constant 0.000000e+00 : f32
    %7 = vector.broadcast %cst_5 : f32 to vector<2x128xf32>
    %8 = arith.subf %7, %6 : vector<2x128xf32>
    %9 = math.exp %8 : vector<2x128xf32>
    %cst_6 = arith.constant 1.000000e+00 : f32
    %10 = vector.broadcast %cst_6 : f32 to vector<2x128xf32>
    %11 = arith.addf %10, %9 : vector<2x128xf32>
    %12 = tpu.reciprocal %11 {approx = true} : vector<2x128xf32> -> vector<2x128xf32>
    %13 = arith.mulf %6, %12 : vector<2x128xf32>
    %14 = arith.truncf %13 : vector<2x128xf32> to vector<2x128xbf16>
    %c0_7 = arith.constant 0 : index
    %c0_8 = arith.constant 0 : index
    %15 = vector.load %arg3[%c0_7, %c0_8] : memref<128x128xbf16, #tpu.memory_space<vmem>>, vector<128x128xbf16>
    %cst_9 = arith.constant dense<0.000000e+00> : vector<2x128xf32>
    %16 = tpu.matmul %14, %15, %cst_9 {dimension_numbers = #tpu.dot_dimension_numbers<[1], [0], [0], [1], [0, 0, 1, 1], [], []>} : vector<2x128xbf16>, vector<128x128xbf16>, vector<2x128xf32> -> vector<2x128xf32>
    %c0_10 = arith.constant 0 : index
    %c0_11 = arith.constant 0 : index
    %17 = vector.load %arg4[%c0_10, %c0_11] : memref<1x128xf32, #tpu.memory_space<vmem>>, vector<1x128xf32>
    %18 = vector.broadcast %17 : vector<1x128xf32> to vector<2x128xf32>
    %19 = arith.addf %16, %18 : vector<2x128xf32>
    %c0_12 = arith.constant 0 : index
    %c0_13 = arith.constant 0 : index
    %20 = vector.load %arg5[%c0_12, %c0_13] : memref<2x128xf32, #tpu.memory_space<vmem>>, vector<2x128xf32>
    tpu.vector_store %arg5[%c0_12, %c0_13], %19 {strides = array<i32>} : memref<2x128xf32, #tpu.memory_space<vmem>>, vector<2x128xf32>,
    return
  }
}

</mosaic_0001>

<llo_original>
// kernel: tpu_custom_call.1
$region0: #{tpu_custom_call.1}
  #allocation0 [shape = 'u32[]', space=smem, size = 0x4, offset = 0x4, fixed_abs, tag = 'smem constant byte address 0x4 - core index']
  #allocation1 [shape = 'u32[144,128]{1,0:T(1,128)}', space=vmem, size = 0x12000, scoped, tag = 'internal scratch']
  %s0 = inlined_call_operand.hbm [shape: f32[2,32], index: 0, kind: input, shape index: {}]
  %s1 = inlined_call_operand.hbm [shape: bf16[32,128], index: 1, kind: input, shape index: {}]
  %s2 = inlined_call_operand.vmem [shape: f32[1,128], index: 2, kind: input, shape index: {}]
  %s3 = inlined_call_operand.hbm [shape: bf16[128,128], index: 3, kind: input, shape index: {}]
  %s4 = inlined_call_operand.vmem [shape: f32[1,128], index: 4, kind: input, shape index: {}]
  %s5 = inlined_call_operand.hbm [shape: f32[2,128], index: 5, kind: output, shape index: {}]
  %s6 = sld [smem:[#allocation0]]
  $region42: #{tpu_custom_call.1} parent=0
    _
  %s8 = ssub.s32 1, %s6
  %s9 = scalar_select 0, %s8, %s6
  $region1: #{tpu_custom_call.1} parent=0
    #allocation2 [shape = 'u8[1024]{0}', space=vmem, size = 0x400, scoped, tag = 'input window, operand 0, single buffered']
    #allocation3 [shape = 's32[1]{0}', space=sflag, size = 0x4, scoped, tag = 'scoped memory for tpu_custom_call.1']
    #allocation4 [shape = 's32[1]{0}', space=sflag, size = 0x4, scoped, tag = 'scoped memory for tpu_custom_call.1']
    #allocation5 [shape = 'u8[8192]{0}', space=vmem, size = 0x2000, scoped, tag = 'input window, operand 1, single buffered']
    #allocation6 [shape = 's32[1]{0}', space=sflag, size = 0x4, scoped, tag = 'scoped memory for tpu_custom_call.1']
    #allocation7 [shape = 'u8[32768]{0}', space=vmem, size = 0x8000, scoped, tag = 'input window, operand 3, single buffered']
    #allocation8 [shape = 'u8[1024]{0}', space=vmem, size = 0x400, scoped, tag = 'output window, operand 0, single buffered']
    %10 = vsyncpa [#allocation3], 0
    %11 = vsyncpa [#allocation6], 0
    %12 = vsyncpa [#allocation4], 0
    // Predicated region
    $region2: #{tpu_custom_call.1} parent=1 // pred_check
      _
    $region3: #{tpu_custom_call.1} parent=1 // pred_check_branch
      %14 = sbr.rel (0) target = $region5
    $region4: #{tpu_custom_call.1} parent=1 // pred_region
      %s16 = ssub.s32 32, 32
      %17 = vsyncadd [#allocation3], %s16
      %s19 = sshll.u32 [#allocation2], 4
      %s20 = int_to_ptr.vmem [resolvable:$true] %s19
      %22 = dma.hbm_to_vmem [thread:$0]  %s0, 32, %s20, [#allocation3]
    $region5: #{tpu_custom_call.1} parent=1 // pred_fallthru
      _
    // Predicated region
    $region6: #{tpu_custom_call.1} parent=1 // pred_check
      _
    $region7: #{tpu_custom_call.1} parent=1 // pred_check_branch
      %24 = sbr.rel (0) target = $region9
    $region8: #{tpu_custom_call.1} parent=1 // pred_region
      %s26 = ssub.s32 256, 256
      %27 = vsyncadd [#allocation6], %s26
      %s28 = sshll.u32 [#allocation5], 4
      %s29 = int_to_ptr.vmem [resolvable:$true] %s28
      %34 = dma.hbm_to_vmem [thread:$0]  %s1, 256, %s29, [#allocation6], 64, 64, 4
    $region9: #{tpu_custom_call.1} parent=1 // pred_fallthru
      _
    // Predicated region
    $region10: #{tpu_custom_call.1} parent=1 // pred_check
      _
    $region11: #{tpu_custom_call.1} parent=1 // pred_check_branch
      %36 = sbr.rel (0) target = $region13
    $region12: #{tpu_custom_call.1} parent=1 // pred_region
      _
    $region13: #{tpu_custom_call.1} parent=1 // pred_fallthru
      _
    // Predicated region
    $region14: #{tpu_custom_call.1} parent=1 // pred_check
      _
    $region15: #{tpu_custom_call.1} parent=1 // pred_check_branch
      %38 = sbr.rel (0) target = $region17
    $region16: #{tpu_custom_call.1} parent=1 // pred_region
      %s40 = ssub.s32 1024, 1024
      %41 = vsyncadd [#allocation6], %s40
      %s42 = sshll.u32 [#allocation7], 4
      %s43 = int_to_ptr.vmem [resolvable:$true] %s42
      %48 = dma.hbm_to_vmem [thread:$0]  %s3, 1024, %s43, [#allocation6], 64, 64, 4
    $region17: #{tpu_custom_call.1} parent=1 // pred_fallthru
      _
    // Predicated region
    $region18: #{tpu_custom_call.1} parent=1 // pred_check
      _
    $region19: #{tpu_custom_call.1} parent=1 // pred_check_branch
      %50 = sbr.rel (0) target = $region21
    $region20: #{tpu_custom_call.1} parent=1 // pred_region
      _
    $region21: #{tpu_custom_call.1} parent=1 // pred_fallthru
      _
    // Predicated region
    $region22: #{tpu_custom_call.1} parent=1 // pred_check
      _
    $region23: #{tpu_custom_call.1} parent=1 // pred_check_branch
      %52 = sbr.rel (0) target = $region25
    $region24: #{tpu_custom_call.1} parent=1 // pred_region
      %53 = dma.done [#allocation3], 32
    $region25: #{tpu_custom_call.1} parent=1 // pred_fallthru
      _
    // Predicated region
    $region26: #{tpu_custom_call.1} parent=1 // pred_check
      _
    $region27: #{tpu_custom_call.1} parent=1 // pred_check_branch
      %55 = sbr.rel (0) target = $region29
    $region28: #{tpu_custom_call.1} parent=1 // pred_region
      %56 = dma.done [#allocation6], 256
    $region29: #{tpu_custom_call.1} parent=1 // pred_fallthru
      _
    // Predicated region
    $region30: #{tpu_custom_call.1} parent=1 // pred_check
      _
    $region31: #{tpu_custom_call.1} parent=1 // pred_check_branch
      %58 = sbr.rel (0) target = $region33
    $region32: #{tpu_custom_call.1} parent=1 // pred_region
      %59 = dma.done [#allocation6], 1024
    $region33: #{tpu_custom_call.1} parent=1 // pred_fallthru
      _
    %v61 = vld [vmem:[#allocation2] sm:$0x3]
    %v62 = vpack.c.bf16 %v61, %v61
    %v63 = vld [vmem:[#allocation5] sm:$0xf]
    %v64 = vld [vmem:[#allocation5 + $0x4] sm:$0xf]
    %v65 = vld [vmem:[#allocation5 + $0x8] sm:$0xf]
    %v66 = vld [vmem:[#allocation5 + $0xc] sm:$0xf]
    %v67 = vld [vmem:[%s2] sm:$0x1]
    %v69 = vlaneseq
    %v70 = vshrl.u32 %v69, 7
    %v71 = vsub.s32 0, %v70
    %v72 = vrot.slane %v67, %v71
    %v78 = vunpack.c.l.b16 %v63
    %v79 = vunpack.c.l.b16 %v64
    %v80 = vunpack.c.l.b16 %v65
    %v81 = vunpack.c.l.b16 %v66
    %v82 = vpack.c.b16 %v79, %v78
    %v83 = vpack.c.b16 %v81, %v80
    %vm86 = vcmask 261120
    %v88 = vsel %vm86, %v62, 0
    %90 = vmatprep.subr.bf16.mxu0 0
    %91 = vmatpush1.bf16.msra.mxu0 %v82
    %92 = vmatprep.subr.bf16.mxu0 0
    %93 = vmatpush1.bf16.msra.mxu0 %v83
    %94 = vmatprep.subr.bf16.mxu0 0
    %95 = vmatpush1.bf16.msra.mxu0 0
    %96 = vmatprep.subr.bf16.mxu0 0
    %97 = vmatpush1.bf16.msra.mxu0 0
    %98 = vmatprep.subr.bf16.mxu0 0
    %99 = vmatpush1.bf16.msra.mxu0 0
    %100 = vmatprep.subr.bf16.mxu0 0
    %101 = vmatpush1.bf16.msra.mxu0 0
    %102 = vmatprep.subr.bf16.mxu0 0
    %103 = vmatpush1.bf16.msra.mxu0 0
    %104 = vmatprep.subr.bf16.mxu0 0
    %105 = vmatpush1.bf16.msra.mxu0 0
    %106 = vmatprep.subr.bf16.mxu0 0
    %107 = vmatpush1.bf16.msra.mxu0 0
    %108 = vmatprep.subr.bf16.mxu0 0
    %109 = vmatpush1.bf16.msra.mxu0 0
    %110 = vmatprep.subr.bf16.mxu0 0
    %111 = vmatpush1.bf16.msra.mxu0 0
    %112 = vmatprep.subr.bf16.mxu0 0
    %113 = vmatpush1.bf16.msra.mxu0 0
    %114 = vmatprep.subr.bf16.mxu0 0
    %115 = vmatpush1.bf16.msra.mxu0 0
    %116 = vmatprep.subr.bf16.mxu0 0
    %117 = vmatpush1.bf16.msra.mxu0 0
    %118 = vmatprep.subr.bf16.mxu0 0
    %119 = vmatpush1.bf16.msra.mxu0 0
    %120 = vmatprep.subr.bf16.mxu0 0
    %121 = vmatpush1.bf16.msra.mxu0 0
    %122 = vmatprep.mubr.bf16.mxu0 0
    %123 = vmatmul.mubr.bf16.gmra.mrb[0].mxu0 %v88
    %v124 = vpop.f32.mrb[0].mxu0
    %v125 = vadd.f32 %v72, %v124
    %v126 = vpop.f32.mrb[0].mxu0
    %v127 = vpop.f32.mrb[0].mxu0
    %v128 = vpop.f32.mrb[0].mxu0
    %129 = vdwg.mxu0
    %v130 = vsub.f32 0.0, %v125
    %v131 = vmul.f32 %v130, 1.442695
    %v132 = vpow.pop %v131
    %v133 = vadd.f32 %v132, 1.0
    %v134 = vrcp.pop %v133
    %v135 = vmul.f32 %v125, %v134
    %v136 = vpack.c.bf16 %v135, %v135
    %v137 = vld [vmem:[#allocation7] sm:$0xf]
    %v138 = vld [vmem:[#allocation7 + $0x4] sm:$0xf]
    %v139 = vld [vmem:[#allocation7 + $0x8] sm:$0xf]
    %v140 = vld [vmem:[#allocation7 + $0xc] sm:$0xf]
    %v141 = vld [vmem:[#allocation7 + $0x10] sm:$0xf]
    %v142 = vld [vmem:[#allocation7 + $0x14] sm:$0xf]
    %v143 = vld [vmem:[#allocation7 + $0x18] sm:$0xf]
    %v144 = vld [vmem:[#allocation7 + $0x1c] sm:$0xf]
    %v145 = vld [vmem:[#allocation7 + $0x20] sm:$0xf]
    %v146 = vld [vmem:[#allocation7 + $0x24] sm:$0xf]
    %v147 = vld [vmem:[#allocation7 + $0x28] sm:$0xf]
    %v148 = vld [vmem:[#allocation7 + $0x2c] sm:$0xf]
    %v149 = vld [vmem:[#allocation7 + $0x30] sm:$0xf]
    %v150 = vld [vmem:[#allocation7 + $0x34] sm:$0xf]
    %v151 = vld [vmem:[#allocation7 + $0x38] sm:$0xf]
    %v152 = vld [vmem:[#allocation7 + $0x3c] sm:$0xf]
    %v153 = vld [vmem:[%s4] sm:$0x1]
    %v155 = vlaneseq
    %v156 = vshrl.u32 %v155, 7
    %v157 = vsub.s32 0, %v156
    %v158 = vrot.slane %v153, %v157
    %v176 = vunpack.c.l.b16 %v137
    %v177 = vunpack.c.l.b16 %v138
    %v178 = vunpack.c.l.b16 %v139
    %v179 = vunpack.c.l.b16 %v140
    %v180 = vunpack.c.l.b16 %v141
    %v181 = vunpack.c.l.b16 %v142
    %v182 = vunpack.c.l.b16 %v143
    %v183 = vunpack.c.l.b16 %v144
    %v184 = vunpack.c.l.b16 %v145
    %v185 = vunpack.c.l.b16 %v146
    %v186 = vunpack.c.l.b16 %v147
    %v187 = vunpack.c.l.b16 %v148
    %v188 = vunpack.c.l.b16 %v149
    %v189 = vunpack.c.l.b16 %v150
    %v190 = vunpack.c.l.b16 %v151
    %v191 = vunpack.c.l.b16 %v152
    %v192 = vpack.c.b16 %v177, %v176
    %v193 = vpack.c.b16 %v179, %v178
    %v194 = vpack.c.b16 %v181, %v180
    %v195 = vpack.c.b16 %v183, %v182
    %v196 = vpack.c.b16 %v185, %v184
    %v197 = vpack.c.b16 %v187, %v186
    %v198 = vpack.c.b16 %v189, %v188
    %v199 = vpack.c.b16 %v191, %v190
    %208 = vmatprep.subr.bf16.mxu0 0
    %209 = vmatpush1.bf16.msra.mxu0 %v192
    %210 = vmatprep.subr.bf16.mxu0 0
    %211 = vmatpush1.bf16.msra.mxu0 %v193
    %212 = vmatprep.subr.bf16.mxu0 0
    %213 = vmatpush1.bf16.msra.mxu0 %v194
    %214 = vmatprep.subr.bf16.mxu0 0
    %215 = vmatpush1.bf16.msra.mxu0 %v195
    %216 = vmatprep.subr.bf16.mxu0 0
    %217 = vmatpush1.bf16.msra.mxu0 %v196
    %218 = vmatprep.subr.bf16.mxu0 0
    %219 = vmatpush1.bf16.msra.mxu0 %v197
    %220 = vmatprep.subr.bf16.mxu0 0
    %221 = vmatpush1.bf16.msra.mxu0 %v198
    %222 = vmatprep.subr.bf16.mxu0 0
    %223 = vmatpush1.bf16.msra.mxu0 %v199
    %224 = vmatprep.subr.bf16.mxu0 0
    %225 = vmatpush1.bf16.msra.mxu0 0
    %226 = vmatprep.subr.bf16.mxu0 0
    %227 = vmatpush1.bf16.msra.mxu0 0
    %228 = vmatprep.subr.bf16.mxu0 0
    %229 = vmatpush1.bf16.msra.mxu0 0
    %230 = vmatprep.subr.bf16.mxu0 0
    %231 = vmatpush1.bf16.msra.mxu0 0
    %232 = vmatprep.subr.bf16.mxu0 0
    %233 = vmatpush1.bf16.msra.mxu0 0
    %234 = vmatprep.subr.bf16.mxu0 0
    %235 = vmatpush1.bf16.msra.mxu0 0
    %236 = vmatprep.subr.bf16.mxu0 0
    %237 = vmatpush1.bf16.msra.mxu0 0
    %238 = vmatprep.subr.bf16.mxu0 0
    %239 = vmatpush1.bf16.msra.mxu0 0
    %240 = vmatprep.mubr.bf16.mxu0 0
    %241 = vmatmul.mubr.bf16.gmra.mrb[0].mxu0 %v136
    %v242 = vpop.f32.mrb[0].mxu0
    %v243 = vadd.f32 %v158, %v242
    %v244 = vpop.f32.mrb[0].mxu0
    %v245 = vpop.f32.mrb[0].mxu0
    %v246 = vpop.f32.mrb[0].mxu0
    %247 = vdwg.mxu0
    %248 = vst [vmem:[#allocation8] sm:$0x3] %v243
    // Predicated region
    $region34: #{tpu_custom_call.1} parent=1 // pred_check
      _
    $region35: #{tpu_custom_call.1} parent=1 // pred_check_branch
      %250 = sbr.rel (0) target = $region37
    $region36: #{tpu_custom_call.1} parent=1 // pred_region
      %s252 = ssub.s32 32, 32
      %253 = vsyncadd [#allocation4], %s252
      %s255 = sshll.u32 [#allocation8], 4
      %s256 = int_to_ptr.vmem [resolvable:$true] %s255
      %258 = dma.vmem_to_hbm [thread:$0]  %s256, 32, %s5, [#allocation4]
    $region37: #{tpu_custom_call.1} parent=1 // pred_fallthru
      _
    // Predicated region
    $region38: #{tpu_custom_call.1} parent=1 // pred_check
      _
    $region39: #{tpu_custom_call.1} parent=1 // pred_check_branch
      %260 = sbr.rel (0) target = $region41
    $region40: #{tpu_custom_call.1} parent=1 // pred_region
      %261 = dma.done [#allocation4], 32
    $region41: #{tpu_custom_call.1} parent=1 // pred_fallthru
      _
    %262 = vsyncpa [#allocation3], 1
    %263 = vsyncpa [#allocation6], 1
    %264 = vsyncpa [#allocation4], 1

</llo_original>
